<compile_context>
chip_gen: v7x
topology: tpu7x:2x2x1
jax: 0.10.0
libtpu: 0.0.40
codegen_flags: <defaults>
</compile_context>

<pallas_src>
import functools

import jax
import jax.numpy as jnp
from jax import lax
from jax.experimental import pallas as pl
from jax.experimental.pallas import tpu as pltpu

_EPS = 1e-8


def _ims_l1_kernel(x_ref, y_ref, out_ref, acc_ref, *,
                   C, Nb, R, tile_rows, tiles_per_chunk,
                   num_real_tiles, grid_tiles):
    """One (image-block nb, pixel-chunk c, tile t) step.

    x_ref / y_ref : (Nb, C, tile_rows, 128) input tiles
    out_ref       : (1, 128) per-(image-block, chunk) lane-dense partial sum
    acc_ref       : (acc_rows, 128) f32 VMEM accumulator (acc_rows = 8 or 1)
    """
    c_id = pl.program_id(1)
    t = pl.program_id(2)

    @pl.when(t == 0)
    def _():
        acc_ref[...] = jnp.zeros_like(acc_ref)

    def ims(v):
        # Channel min/max via unrolled pairwise elementwise ops over the small
        # channel axis -> pure VPU on (8,128)-dense vregs, in the input dtype
        # (exact for min/max); widen to f32 only for the stretch.
        vmax = v[:, 0]
        vmin = v[:, 0]
        for ci in range(1, C):
            vmax = jnp.maximum(vmax, v[:, ci])
            vmin = jnp.minimum(vmin, v[:, ci])
        vmin32 = vmin.astype(jnp.float32)
        # One reciprocal per pixel instead of C divisions (approx=False keeps
        # parity with the pure-JAX reference within f32 rounding).
        inv = pl.reciprocal(vmax.astype(jnp.float32) - vmin32 + _EPS,
                            approx=False)
        return (v.astype(jnp.float32) - vmin32[:, None]) * inv[:, None]

    x = x_ref[...]                       # (Nb, C, tr, 128), native dtype
    y = y_ref[...]
    # Sum |diff| over channels: elementwise adds of C planes (VPU).
    d = jnp.sum(jnp.abs(ims(x) - ims(y)), axis=1)   # (Nb, tr, 128) f32

    def reduce_rows(dd):
        # Collapse to a sublane-aligned partial before touching the
        # accumulator (tiny VMEM traffic per tile).
        if tile_rows % 8 == 0:
            return dd.reshape(Nb * (tile_rows // 8), 8, 128).sum(axis=0)
        return jnp.sum(dd, axis=(0, 1)).reshape(1, 128)

    ragged = (R % tile_rows) != 0            # static
    has_oob_tiles = grid_tiles > num_real_tiles   # static (odd tile count / 2 chunks)

    if ragged or has_oob_tiles:
        g = c_id * tiles_per_chunk + t       # global tile index
        mask_start = (num_real_tiles - 1) if ragged else num_real_tiles

        @pl.when(g < mask_start)
        def _():
            acc_ref[...] += reduce_rows(d)

        @pl.when(g >= mask_start)
        def _():
            # Ragged tail tile and/or clamped-reread out-of-range tiles:
            # keep the select (drops NaN/Inf from stretched garbage rows).
            rows_left = R - g * tile_rows
            row_ids = lax.broadcasted_iota(jnp.int32, (1, tile_rows, 128), 1)
            dm = jnp.where(row_ids < rows_left, d, 0.0)
            acc_ref[...] += reduce_rows(dm)
    else:
        acc_ref[...] += reduce_rows(d)

    @pl.when(t == pl.num_programs(2) - 1)
    def _():
        # Collapse sublanes once per (image-block, chunk); lanes stay dense.
        out_ref[...] = jnp.sum(acc_ref[...], axis=0, keepdims=True)


def interval_max_saturation_loss(x, y, *, vmem_budget_bytes=None,
                                 tile_rows=None, batch_block=None):
    """L1(mean) between channel-interval-stretched x and y. x, y: (N, C, H, W)."""
    N, C, H, W = x.shape
    assert y.shape == x.shape
    HW = H * W

    # Transpose-free relayout: NCHW -> (N, C, HW) -> (N, C, R, 128), all
    # contiguous reshapes.
    xf = x.reshape(N, C, HW)
    yf = y.reshape(N, C, HW)
    pad = (-HW) % 128
    if pad:
        # Zero padding is exact: stretched zeros match on both inputs, so the
        # padded pixels contribute 0 to the L1 sum.
        xf = jnp.pad(xf, ((0, 0), (0, 0), (0, pad)))
        yf = jnp.pad(yf, ((0, 0), (0, 0), (0, pad)))
    R = (HW + pad) // 128
    xr = xf.reshape(N, C, R, 128)
    yr = yf.reshape(N, C, R, 128)

    itemsize = jnp.dtype(x.dtype).itemsize

    # --- VMEM budget (smaller cap on v7x' 64 MiB, larger on v5e/v6e 128 MiB) ---
    if vmem_budget_bytes is None:
        try:
            cap = pltpu.get_tpu_info().vmem_capacity_bytes
        except Exception:
            cap = 64 << 20
        vmem_budget_bytes = min(cap // 2, 96 << 20)

    # Bytes held in VMEM per pixel-row of one image: 2 inputs x 2 pipeline
    # buffers x C channels x 128 lanes.
    bytes_per_row = 4 * C * 128 * itemsize
    align = 8 * max(1, 4 // itemsize)        # sublane packing (8 f32 / 16 bf16)

    if tile_rows is None:
        rows_fit = max(1, vmem_budget_bytes // bytes_per_row)
        if R <= rows_fit:
            tile_rows = R                    # full extent -> no (8,128) constraint
        else:
            tile_rows = min(rows_fit, 2048)
            tile_rows = max(align, (tile_rows // align) * align)
    else:
        tile_rows = min(tile_rows, R)
        if tile_rows < R:
            assert tile_rows % 8 == 0, "tile_rows < R must be a multiple of 8"

    if batch_block is None:
        if tile_rows >= R:
            # Small images: fold several images into one step to amortize the
            # ~0.35 us per-step pipeline overhead.
            padded_rows = -(-R // 8) * 8
            nb_fit = max(1, vmem_budget_bytes // (padded_rows * bytes_per_row))
            batch_block = 1
            for cand in range(min(N, nb_fit), 0, -1):
                if N % cand == 0:
                    batch_block = cand
                    break
        else:
            batch_block = 1
    Nb = batch_block
    assert N % Nb == 0, "batch_block must divide N"

    T = pl.cdiv(R, tile_rows)                # real pixel tiles per image
    n_chunks = 2 if T >= 2 else 1            # 2nd parallel axis (both v7x TCs)
    tpc = pl.cdiv(T, n_chunks)               # tiles per chunk (arbitrary axis)
    G = n_chunks * tpc                       # grid tiles (may exceed T by 1)

    acc_rows = 8 if tile_rows % 8 == 0 else 1

    kernel = functools.partial(
        _ims_l1_kernel, C=C, Nb=Nb, R=R, tile_rows=tile_rows,
        tiles_per_chunk=tpc, num_real_tiles=T, grid_tiles=G)

    if G > T:
        # Clamp over-run tiles back onto the last real tile; the kernel masks
        # their contribution to exactly zero.
        def in_map(nb, c, t):
            return (nb, 0, jnp.minimum(c * tpc + t, T - 1), 0)
    else:
        def in_map(nb, c, t):
            return (nb, 0, c * tpc + t, 0)

    phys_tile_rows = -(-tile_rows // 8) * 8
    needed_vmem = 4 * Nb * C * phys_tile_rows * 128 * itemsize + 8 * 128 * 4
    vmem_limit = int(max(needed_vmem + (2 << 20), 16 << 20))

    cost = pl.CostEstimate(
        flops=int(12 * N * C * R * 128),
        transcendentals=int(2 * N * R * 128),
        bytes_accessed=int(2 * N * C * R * 128 * itemsize
                           + (N // Nb) * n_chunks * 128 * 4),
    )

    partials = pl.pallas_call(
        kernel,
        out_shape=jax.ShapeDtypeStruct((N // Nb, n_chunks, 1, 128), jnp.float32),
        grid_spec=pltpu.PrefetchScalarGridSpec(
            num_scalar_prefetch=0,
            grid=(N // Nb, n_chunks, tpc),
            in_specs=[
                pl.BlockSpec((Nb, C, tile_rows, 128), in_map),
                pl.BlockSpec((Nb, C, tile_rows, 128), in_map),
            ],
            out_specs=pl.BlockSpec((None, None, 1, 128),
                                   lambda nb, c, t: (nb, c, 0, 0)),
            scratch_shapes=[pltpu.VMEM((acc_rows, 128), jnp.float32)],
        ),
        compiler_params=pltpu.CompilerParams(
            dimension_semantics=("parallel", "parallel", "arbitrary"),
            vmem_limit_bytes=vmem_limit),
        cost_estimate=cost,
    )(xr, yr)

    # L1Loss(reduction='mean') over all N*C*H*W real elements (padding excluded).
    return jnp.sum(partials) / (N * C * HW)


def _ims_ref(v):
    vmax = jnp.max(v, axis=1, keepdims=True)
    vmin = jnp.min(v, axis=1, keepdims=True)
    return (v - vmin) / (vmax - vmin + _EPS)


def _loss_ref(x, y):
    return jnp.mean(jnp.abs(_ims_ref(x) - _ims_ref(y)))


if __name__ == "__main__":
    key = jax.random.PRNGKey(0)

    # Case 1: small NCHW batch (HW multiple of 128); exercises batch folding
    # (both images in a single grid step) and the full-extent tile path.
    kx, ky, key = jax.random.split(key, 3)
    x = jax.random.uniform(kx, (2, 3, 16, 16), dtype=jnp.float32)
    y = jax.random.uniform(ky, (2, 3, 16, 16), dtype=jnp.float32)
    loss = interval_max_saturation_loss(x, y)
    jax.block_until_ready(loss)
    assert jnp.allclose(loss, _loss_ref(x, y), atol=1e-5), (loss, _loss_ref(x, y))

    # Case 2: H*W not a multiple of 128 (exercises lane zero-padding path).
    kx, ky, key = jax.random.split(key, 3)
    x2 = jax.random.uniform(kx, (1, 3, 10, 12), dtype=jnp.float32)
    y2 = jax.random.uniform(ky, (1, 3, 10, 12), dtype=jnp.float32)
    loss2 = interval_max_saturation_loss(x2, y2)
    jax.block_until_ready(loss2)
    assert jnp.allclose(loss2, _loss_ref(x2, y2), atol=1e-5), (loss2, _loss_ref(x2, y2))

    # Case 3: forced small tile -> multiple tiles, two parallel pixel chunks,
    # a ragged last tile and one clamped+masked out-of-range tile.
    kx, ky, key = jax.random.split(key, 3)
    x3 = jax.random.uniform(kx, (1, 3, 48, 48), dtype=jnp.float32)
    y3 = jax.random.uniform(ky, (1, 3, 48, 48), dtype=jnp.float32)
    loss3 = interval_max_saturation_loss(x3, y3, tile_rows=8)
    jax.block_until_ready(loss3)
    assert jnp.allclose(loss3, _loss_ref(x3, y3), atol=1e-5), (loss3, _loss_ref(x3, y3))

    # Case 4: bf16 inputs (halved HBM traffic; min/max in bf16, stretch in f32).
    kx, ky, key = jax.random.split(key, 3)
    x4 = jax.random.uniform(kx, (1, 4, 24, 24), dtype=jnp.float32).astype(jnp.bfloat16)
    y4 = jax.random.uniform(ky, (1, 4, 24, 24), dtype=jnp.float32).astype(jnp.bfloat16)
    loss4 = interval_max_saturation_loss(x4, y4)
    jax.block_until_ready(loss4)
    ref4 = _loss_ref(x4.astype(jnp.float32), y4.astype(jnp.float32))
    assert jnp.allclose(loss4, ref4, atol=1e-5), (loss4, ref4)

    print("KERNEL_OK")
</pallas_src>

<mosaic_0001>
module attributes {stable_mosaic.version = 11 : i64} {
  func.func @_ims_l1_kernel(%arg0: i32, %arg1: i32, %arg2: i32, %arg3: memref<2x3x2x128xf32, #tpu.memory_space<vmem>>, %arg4: memref<2x3x2x128xf32, #tpu.memory_space<vmem>>, %arg5: memref<1x1x1x128xf32, #tpu.memory_space<vmem>>, %arg6: memref<1x128xf32, #tpu.memory_space<vmem>>) attributes {dimension_semantics = [#tpu.dimension_semantics<parallel>, #tpu.dimension_semantics<parallel>, #tpu.dimension_semantics<arbitrary>], iteration_bounds = array<i64: 1, 1, 1>, scalar_prefetch = 0 : i64, scratch_operands = 1 : i64, tpu.core_type = #tpu.core_type<tc>, window_params = [{transform_indices = @transform_0, window_bounds = array<i64: 2, 3, 2, 128>}, {transform_indices = @transform_1, window_bounds = array<i64: 2, 3, 2, 128>}, {transform_indices = @transform_2, window_bounds = array<i64: 1, 1, 1, 128>}]} {
    %c0_i32 = arith.constant 0 : i32
    %0 = arith.cmpi eq, %arg2, %c0_i32 : i32
    %1 = arith.extui %0 : i1 to i32
    %c0_i32_0 = arith.constant 0 : i32
    %2 = arith.cmpi ne, %1, %c0_i32_0 : i32
    scf.if %2 {
      %cst_17 = arith.constant 0.000000e+00 : f32
      %68 = vector.broadcast %cst_17 : f32 to vector<1x128xf32>
      %c0_18 = arith.constant 0 : index
      %c0_19 = arith.constant 0 : index
      %69 = vector.load %arg6[%c0_18, %c0_19] : memref<1x128xf32, #tpu.memory_space<vmem>>, vector<1x128xf32>
      tpu.vector_store %arg6[%c0_18, %c0_19], %68 {strides = array<i32>} : memref<1x128xf32, #tpu.memory_space<vmem>>, vector<1x128xf32>,
    } else {
    }
    %c0 = arith.constant 0 : index
    %c0_1 = arith.constant 0 : index
    %c0_2 = arith.constant 0 : index
    %c0_3 = arith.constant 0 : index
    %3 = vector.load %arg3[%c0, %c0_1, %c0_2, %c0_3] : memref<2x3x2x128xf32, #tpu.memory_space<vmem>>, vector<2x3x2x128xf32>
    %c0_4 = arith.constant 0 : index
    %c0_5 = arith.constant 0 : index
    %c0_6 = arith.constant 0 : index
    %c0_7 = arith.constant 0 : index
    %4 = vector.load %arg4[%c0_4, %c0_5, %c0_6, %c0_7] : memref<2x3x2x128xf32, #tpu.memory_space<vmem>>, vector<2x3x2x128xf32>
    %5 = vector.extract_strided_slice %3 {offsets = [0, 0, 0, 0], sizes = [2, 1, 2, 128], strides = [1, 1, 1, 1]} : vector<2x3x2x128xf32> to vector<2x1x2x128xf32>
    %6 = vector.shape_cast %5 : vector<2x1x2x128xf32> to vector<2x2x128xf32>
    %7 = vector.extract_strided_slice %3 {offsets = [0, 0, 0, 0], sizes = [2, 1, 2, 128], strides = [1, 1, 1, 1]} : vector<2x3x2x128xf32> to vector<2x1x2x128xf32>
    %8 = vector.shape_cast %7 : vector<2x1x2x128xf32> to vector<2x2x128xf32>
    %9 = vector.extract_strided_slice %3 {offsets = [0, 1, 0, 0], sizes = [2, 1, 2, 128], strides = [1, 1, 1, 1]} : vector<2x3x2x128xf32> to vector<2x1x2x128xf32>
    %10 = vector.shape_cast %9 : vector<2x1x2x128xf32> to vector<2x2x128xf32>
    %11 = arith.maximumf %6, %10 : vector<2x2x128xf32>
    %12 = vector.extract_strided_slice %3 {offsets = [0, 1, 0, 0], sizes = [2, 1, 2, 128], strides = [1, 1, 1, 1]} : vector<2x3x2x128xf32> to vector<2x1x2x128xf32>
    %13 = vector.shape_cast %12 : vector<2x1x2x128xf32> to vector<2x2x128xf32>
    %14 = arith.minimumf %8, %13 : vector<2x2x128xf32>
    %15 = vector.extract_strided_slice %3 {offsets = [0, 2, 0, 0], sizes = [2, 1, 2, 128], strides = [1, 1, 1, 1]} : vector<2x3x2x128xf32> to vector<2x1x2x128xf32>
    %16 = vector.shape_cast %15 : vector<2x1x2x128xf32> to vector<2x2x128xf32>
    %17 = arith.maximumf %11, %16 : vector<2x2x128xf32>
    %18 = vector.extract_strided_slice %3 {offsets = [0, 2, 0, 0], sizes = [2, 1, 2, 128], strides = [1, 1, 1, 1]} : vector<2x3x2x128xf32> to vector<2x1x2x128xf32>
    %19 = vector.shape_cast %18 : vector<2x1x2x128xf32> to vector<2x2x128xf32>
    %20 = arith.minimumf %14, %19 : vector<2x2x128xf32>
    %21 = arith.subf %17, %20 : vector<2x2x128xf32>
    %cst = arith.constant 9.99999993E-9 : f32
    %22 = vector.broadcast %cst : f32 to vector<2x2x128xf32>
    %23 = arith.addf %21, %22 : vector<2x2x128xf32>
    %24 = tpu.reciprocal %23 : vector<2x2x128xf32> -> vector<2x2x128xf32>
    %25 = vector.shape_cast %20 : vector<2x2x128xf32> to vector<2x1x2x128xf32>
    %26 = vector.broadcast %25 : vector<2x1x2x128xf32> to vector<2x3x2x128xf32>
    %27 = arith.subf %3, %26 : vector<2x3x2x128xf32>
    %28 = vector.shape_cast %24 : vector<2x2x128xf32> to vector<2x1x2x128xf32>
    %29 = vector.broadcast %28 : vector<2x1x2x128xf32> to vector<2x3x2x128xf32>
    %30 = arith.mulf %27, %29 : vector<2x3x2x128xf32>
    %31 = vector.extract_strided_slice %4 {offsets = [0, 0, 0, 0], sizes = [2, 1, 2, 128], strides = [1, 1, 1, 1]} : vector<2x3x2x128xf32> to vector<2x1x2x128xf32>
    %32 = vector.shape_cast %31 : vector<2x1x2x128xf32> to vector<2x2x128xf32>
    %33 = vector.extract_strided_slice %4 {offsets = [0, 0, 0, 0], sizes = [2, 1, 2, 128], strides = [1, 1, 1, 1]} : vector<2x3x2x128xf32> to vector<2x1x2x128xf32>
    %34 = vector.shape_cast %33 : vector<2x1x2x128xf32> to vector<2x2x128xf32>
    %35 = vector.extract_strided_slice %4 {offsets = [0, 1, 0, 0], sizes = [2, 1, 2, 128], strides = [1, 1, 1, 1]} : vector<2x3x2x128xf32> to vector<2x1x2x128xf32>
    %36 = vector.shape_cast %35 : vector<2x1x2x128xf32> to vector<2x2x128xf32>
    %37 = arith.maximumf %32, %36 : vector<2x2x128xf32>
    %38 = vector.extract_strided_slice %4 {offsets = [0, 1, 0, 0], sizes = [2, 1, 2, 128], strides = [1, 1, 1, 1]} : vector<2x3x2x128xf32> to vector<2x1x2x128xf32>
    %39 = vector.shape_cast %38 : vector<2x1x2x128xf32> to vector<2x2x128xf32>
    %40 = arith.minimumf %34, %39 : vector<2x2x128xf32>
    %41 = vector.extract_strided_slice %4 {offsets = [0, 2, 0, 0], sizes = [2, 1, 2, 128], strides = [1, 1, 1, 1]} : vector<2x3x2x128xf32> to vector<2x1x2x128xf32>
    %42 = vector.shape_cast %41 : vector<2x1x2x128xf32> to vector<2x2x128xf32>
    %43 = arith.maximumf %37, %42 : vector<2x2x128xf32>
    %44 = vector.extract_strided_slice %4 {offsets = [0, 2, 0, 0], sizes = [2, 1, 2, 128], strides = [1, 1, 1, 1]} : vector<2x3x2x128xf32> to vector<2x1x2x128xf32>
    %45 = vector.shape_cast %44 : vector<2x1x2x128xf32> to vector<2x2x128xf32>
    %46 = arith.minimumf %40, %45 : vector<2x2x128xf32>
    %47 = arith.subf %43, %46 : vector<2x2x128xf32>
    %cst_8 = arith.constant 9.99999993E-9 : f32
    %48 = vector.broadcast %cst_8 : f32 to vector<2x2x128xf32>
    %49 = arith.addf %47, %48 : vector<2x2x128xf32>
    %50 = tpu.reciprocal %49 : vector<2x2x128xf32> -> vector<2x2x128xf32>
    %51 = vector.shape_cast %46 : vector<2x2x128xf32> to vector<2x1x2x128xf32>
    %52 = vector.broadcast %51 : vector<2x1x2x128xf32> to vector<2x3x2x128xf32>
    %53 = arith.subf %4, %52 : vector<2x3x2x128xf32>
    %54 = vector.shape_cast %50 : vector<2x2x128xf32> to vector<2x1x2x128xf32>
    %55 = vector.broadcast %54 : vector<2x1x2x128xf32> to vector<2x3x2x128xf32>
    %56 = arith.mulf %53, %55 : vector<2x3x2x128xf32>
    %57 = arith.subf %30, %56 : vector<2x3x2x128xf32>
    %58 = math.absf %57 : vector<2x3x2x128xf32>
    %cst_9 = arith.constant dense<0.000000e+00> : vector<2x2x128xf32>
    %59 = vector.multi_reduction <add>, %58, %cst_9 [1] : vector<2x3x2x128xf32> to vector<2x2x128xf32>
    %c0_10 = arith.constant 0 : index
    %c0_11 = arith.constant 0 : index
    %60 = vector.load %arg6[%c0_10, %c0_11] : memref<1x128xf32, #tpu.memory_space<vmem>>, vector<1x128xf32>
    %cst_12 = arith.constant dense<0.000000e+00> : vector<128xf32>
    %61 = vector.multi_reduction <add>, %59, %cst_12 [0, 1] : vector<2x2x128xf32> to vector<128xf32>
    %62 = vector.shape_cast %61 : vector<128xf32> to vector<1x128xf32>
    %63 = arith.addf %60, %62 : vector<1x128xf32>
    %c0_13 = arith.constant 0 : index
    %c0_14 = arith.constant 0 : index
    %64 = vector.load %arg6[%c0_13, %c0_14] : memref<1x128xf32, #tpu.memory_space<vmem>>, vector<1x128xf32>
    tpu.vector_store %arg6[%c0_13, %c0_14], %63 {strides = array<i32>} : memref<1x128xf32, #tpu.memory_space<vmem>>, vector<1x128xf32>,
    %c0_i32_15 = arith.constant 0 : i32
    %65 = arith.cmpi eq, %arg2, %c0_i32_15 : i32
    %66 = arith.extui %65 : i1 to i32
    %c0_i32_16 = arith.constant 0 : i32
    %67 = arith.cmpi ne, %66, %c0_i32_16 : i32
    scf.if %67 {
      %c0_17 = arith.constant 0 : index
      %c0_18 = arith.constant 0 : index
      %68 = vector.load %arg6[%c0_17, %c0_18] : memref<1x128xf32, #tpu.memory_space<vmem>>, vector<1x128xf32>
      %cst_19 = arith.constant dense<0.000000e+00> : vector<128xf32>
      %69 = vector.multi_reduction <add>, %68, %cst_19 [0] : vector<1x128xf32> to vector<128xf32>
      %70 = vector.shape_cast %69 : vector<128xf32> to vector<1x128xf32>
      %c0_20 = arith.constant 0 : index
      %c0_21 = arith.constant 0 : index
      %c0_22 = arith.constant 0 : index
      %c0_23 = arith.constant 0 : index
      %71 = vector.load %arg5[%c0_20, %c0_21, %c0_22, %c0_23] : memref<1x1x1x128xf32, #tpu.memory_space<vmem>>, vector<1x1x1x128xf32>
      %72 = vector.shape_cast %71 : vector<1x1x1x128xf32> to vector<1x128xf32>
      %73 = vector.shape_cast %70 : vector<1x128xf32> to vector<1x1x1x128xf32>
      tpu.vector_store %arg5[%c0_20, %c0_21, %c0_22, %c0_23], %73 {strides = array<i32>} : memref<1x1x1x128xf32, #tpu.memory_space<vmem>>, vector<1x1x1x128xf32>,
    } else {
    }
    return
  }
  func.func @transform_0(%arg0: i32, %arg1: i32, %arg2: i32) -> (i32, i32, i32, i32) {
    %c1_i32 = arith.constant 1 : i32
    %0 = arith.muli %arg1, %c1_i32 : i32
    %1 = arith.addi %0, %arg2 : i32
    %c0_i32 = arith.constant 0 : i32
    %c0_i32_0 = arith.constant 0 : i32
    %c0_i32_1 = arith.constant 0 : i32
    return %arg0, %c0_i32, %1, %c0_i32_0 : i32, i32, i32, i32
  }
  func.func @transform_1(%arg0: i32, %arg1: i32, %arg2: i32) -> (i32, i32, i32, i32) {
    %c1_i32 = arith.constant 1 : i32
    %0 = arith.muli %arg1, %c1_i32 : i32
    %1 = arith.addi %0, %arg2 : i32
    %c0_i32 = arith.constant 0 : i32
    %c0_i32_0 = arith.constant 0 : i32
    %c0_i32_1 = arith.constant 0 : i32
    return %arg0, %c0_i32, %1, %c0_i32_0 : i32, i32, i32, i32
  }
  func.func @transform_2(%arg0: i32, %arg1: i32, %arg2: i32) -> (i32, i32, i32, i32) {
    %c0_i32 = arith.constant 0 : i32
    %c0_i32_0 = arith.constant 0 : i32
    %c0_i32_1 = arith.constant 0 : i32
    return %arg0, %arg1, %c0_i32, %c0_i32_0 : i32, i32, i32, i32
  }
}

</mosaic_0001>

<llo_original>
// kernel: tpu_custom_call.1
$region0: #{tpu_custom_call.1}
  #allocation0 [shape = 'u32[]', space=smem, size = 0x4, offset = 0x4, fixed_abs, tag = 'smem constant byte address 0x4 - core index']
  #allocation1 [shape = 'u32[144,128]{1,0:T(1,128)}', space=vmem, size = 0x12000, scoped, tag = 'internal scratch']
  #allocation2 [shape = 'f32[1,128]{1,0:T(1,128)}', space=vmem, size = 0x200, scoped, tag = 'scratch operand']
  %s0 = inlined_call_operand.hbm [shape: f32[2,3,2,128], index: 0, kind: input, shape index: {}]
  %s1 = inlined_call_operand.hbm [shape: f32[2,3,2,128], index: 1, kind: input, shape index: {}]
  %s2 = inlined_call_operand.hbm [shape: f32[1,1,1,128], index: 2, kind: output, shape index: {}]
  %s3 = sld [smem:[#allocation0]]
  $region34: #{tpu_custom_call.1} parent=0
    _
  %s5 = ssub.s32 1, %s3
  %s6 = scalar_select 0, %s5, %s3
  $region1: #{tpu_custom_call.1} parent=0
    #allocation3 [shape = 'u8[6144]{0}', space=vmem, size = 0x1800, scoped, tag = 'input window, operand 0, single buffered']
    #allocation4 [shape = 's32[1]{0}', space=sflag, size = 0x4, scoped, tag = 'scoped memory for tpu_custom_call.1']
    #allocation5 [shape = 's32[1]{0}', space=sflag, size = 0x4, scoped, tag = 'scoped memory for tpu_custom_call.1']
    #allocation6 [shape = 'u8[6144]{0}', space=vmem, size = 0x1800, scoped, tag = 'input window, operand 1, single buffered']
    #allocation7 [shape = 's32[1]{0}', space=sflag, size = 0x4, scoped, tag = 'scoped memory for tpu_custom_call.1']
    #allocation8 [shape = 'u8[512]{0}', space=vmem, size = 0x400, scoped, tag = 'output window, operand 0, single buffered']
    %7 = vsyncpa [#allocation4], 0
    %8 = vsyncpa [#allocation7], 0
    %9 = vsyncpa [#allocation5], 0
    // Predicated region
    $region2: #{tpu_custom_call.1} parent=1 // pred_check
      _
    $region3: #{tpu_custom_call.1} parent=1 // pred_check_branch
      %11 = sbr.rel (0) target = $region5
    $region4: #{tpu_custom_call.1} parent=1 // pred_region
      %s12 = sadd.s32 0, 0
      %s14 = ssub.s32 192, 192
      %15 = vsyncadd [#allocation4], %s14
      %s16 = smul.addr %s12, 32
      %s17 = scalar_lea.hbm %s0, %s16
      %s18 = sshll.u32 [#allocation3], 4
      %s19 = int_to_ptr.vmem [resolvable:$true] %s18
      %24 = dma.hbm_to_vmem [thread:$0]  %s17, 192, %s19, [#allocation4], 32, 32, 2
    $region5: #{tpu_custom_call.1} parent=1 // pred_fallthru
      _
    // Predicated region
    $region6: #{tpu_custom_call.1} parent=1 // pred_check
      _
    $region7: #{tpu_custom_call.1} parent=1 // pred_check_branch
      %26 = sbr.rel (0) target = $region9
    $region8: #{tpu_custom_call.1} parent=1 // pred_region
      %s27 = sadd.s32 0, 0
      %s29 = ssub.s32 192, 192
      %30 = vsyncadd [#allocation7], %s29
      %s31 = smul.addr %s27, 32
      %s32 = scalar_lea.hbm %s1, %s31
      %s33 = sshll.u32 [#allocation6], 4
      %s34 = int_to_ptr.vmem [resolvable:$true] %s33
      %39 = dma.hbm_to_vmem [thread:$0]  %s32, 192, %s34, [#allocation7], 32, 32, 2
    $region9: #{tpu_custom_call.1} parent=1 // pred_fallthru
      _
    // Predicated region
    $region10: #{tpu_custom_call.1} parent=1 // pred_check
      _
    $region11: #{tpu_custom_call.1} parent=1 // pred_check_branch
      %41 = sbr.rel (0) target = $region13
    $region12: #{tpu_custom_call.1} parent=1 // pred_region
      %42 = dma.done [#allocation4], 192
    $region13: #{tpu_custom_call.1} parent=1 // pred_fallthru
      _
    // Predicated region
    $region14: #{tpu_custom_call.1} parent=1 // pred_check
      _
    $region15: #{tpu_custom_call.1} parent=1 // pred_check_branch
      %44 = sbr.rel (0) target = $region17
    $region16: #{tpu_custom_call.1} parent=1 // pred_region
      %45 = dma.done [#allocation7], 192
    $region17: #{tpu_custom_call.1} parent=1 // pred_fallthru
      _
    %s46 = sadd.s32 0, 0
    %s47 = sadd.s32 0, 0
    %p48 = scmp.eq.s32.totalorder 0, 0
    // Predicated region
    $region18: #{tpu_custom_call.1} parent=1 // pred_check
      %p49 = pneg %p48
    $region19: #{tpu_custom_call.1} parent=1 // pred_check_branch
      %51 = sbr.rel (%p49) target = $region21
    $region20: #{tpu_custom_call.1} parent=1 // pred_region
      %52 = vst [vmem:[#allocation2] sm:$0x1] 0.0
    $region21: #{tpu_custom_call.1} parent=1 // pred_fallthru
      _
    %v53 = vld [vmem:[#allocation3] sm:$0x3]
    %v54 = vld [vmem:[#allocation3 + $0x2] sm:$0x3]
    %v55 = vld [vmem:[#allocation3 + $0x4] sm:$0x3]
    %v56 = vld [vmem:[#allocation3 + $0x6] sm:$0x3]
    %v57 = vld [vmem:[#allocation3 + $0x8] sm:$0x3]
    %v58 = vld [vmem:[#allocation3 + $0xa] sm:$0x3]
    %v59 = vld [vmem:[#allocation6] sm:$0x3]
    %v60 = vld [vmem:[#allocation6 + $0x2] sm:$0x3]
    %v61 = vld [vmem:[#allocation6 + $0x4] sm:$0x3]
    %v62 = vld [vmem:[#allocation6 + $0x6] sm:$0x3]
    %v63 = vld [vmem:[#allocation6 + $0x8] sm:$0x3]
    %v64 = vld [vmem:[#allocation6 + $0xa] sm:$0x3]
    %v65 = vmax.f32 %v53, %v54
    %v66 = vmax.f32 %v56, %v57
    %v67 = vmin.f32 %v53, %v54
    %v68 = vmin.f32 %v56, %v57
    %v69 = vmax.f32 %v65, %v55
    %v70 = vmax.f32 %v66, %v58
    %v71 = vmin.f32 %v67, %v55
    %v72 = vmin.f32 %v68, %v58
    %v73 = vsub.f32 %v69, %v71
    %v74 = vsub.f32 %v70, %v72
    %v75 = vadd.f32 %v73, 1e-08
    %v76 = vadd.f32 %v74, 1e-08
    %v77 = vrcp.pop %v75
    %v78 = vrcp.pop %v76
    %v79 = vsub.f32 %v53, %v71
    %v80 = vsub.f32 %v54, %v71
    %v81 = vsub.f32 %v55, %v71
    %v82 = vsub.f32 %v56, %v72
    %v83 = vsub.f32 %v57, %v72
    %v84 = vsub.f32 %v58, %v72
    %v85 = vmul.f32 %v79, %v77
    %v86 = vmul.f32 %v80, %v77
    %v87 = vmul.f32 %v81, %v77
    %v88 = vmul.f32 %v82, %v78
    %v89 = vmul.f32 %v83, %v78
    %v90 = vmul.f32 %v84, %v78
    %v91 = vmax.f32 %v59, %v60
    %v92 = vmax.f32 %v62, %v63
    %v93 = vmin.f32 %v59, %v60
    %v94 = vmin.f32 %v62, %v63
    %v95 = vmax.f32 %v91, %v61
    %v96 = vmax.f32 %v92, %v64
    %v97 = vmin.f32 %v93, %v61
    %v98 = vmin.f32 %v94, %v64
    %v99 = vsub.f32 %v95, %v97
    %v100 = vsub.f32 %v96, %v98
    %v101 = vadd.f32 %v99, 1e-08
    %v102 = vadd.f32 %v100, 1e-08
    %v103 = vrcp.pop %v101
    %v104 = vrcp.pop %v102
    %v105 = vsub.f32 %v59, %v97
    %v106 = vsub.f32 %v60, %v97
    %v107 = vsub.f32 %v61, %v97
    %v108 = vsub.f32 %v62, %v98
    %v109 = vsub.f32 %v63, %v98
    %v110 = vsub.f32 %v64, %v98
    %v111 = vmul.f32 %v105, %v103
    %v112 = vmul.f32 %v106, %v103
    %v113 = vmul.f32 %v107, %v103
    %v114 = vmul.f32 %v108, %v104
    %v115 = vmul.f32 %v109, %v104
    %v116 = vmul.f32 %v110, %v104
    %v117 = vsub.f32 %v85, %v111
    %v118 = vsub.f32 %v86, %v112
    %v119 = vsub.f32 %v87, %v113
    %v120 = vsub.f32 %v88, %v114
    %v121 = vsub.f32 %v89, %v115
    %v122 = vsub.f32 %v90, %v116
    %v123 = vand.u32 2147483647, %v117
    %v124 = vand.u32 2147483647, %v118
    %v125 = vand.u32 2147483647, %v119
    %v126 = vand.u32 2147483647, %v120
    %v127 = vand.u32 2147483647, %v121
    %v128 = vand.u32 2147483647, %v122
    %vm129 = vcmask 1041408
    %v130 = vsel %vm129, %v123, 0.0
    %v131 = vsel %vm129, %v124, 0.0
    %v132 = vadd.f32 %v130, %v131
    %v133 = vsel %vm129, %v125, 0.0
    %v134 = vadd.f32 %v132, %v133
    %v135 = vsel %vm129, %v126, 0.0
    %v136 = vsel %vm129, %v127, 0.0
    %v137 = vadd.f32 %v135, %v136
    %v138 = vsel %vm129, %v128, 0.0
    %v139 = vadd.f32 %v137, %v138
    %v140 = vld [vmem:[#allocation2] sm:$0x1]
    %v141 = vsel %vm129, %v134, 0.0
    %v142 = vsel %vm129, %v139, 0.0
    %v143 = vadd.f32 %v141, %v142
    %v144 = vrot.slane %v143, 4
    %v145 = vadd.f32 %v143, %v144
    %v146 = vrot.slane %v145, 2
    %v147 = vadd.f32 %v145, %v146
    %v148 = vrot.slane %v147, 1
    %v149 = vadd.f32 %v147, %v148
    %v150 = vadd.f32 %v140, %v149
    %151 = vst [vmem:[#allocation2] sm:$0x1] %v150
    // Predicated region
    $region22: #{tpu_custom_call.1} parent=1 // pred_check
      %p152 = pneg %p48
    $region23: #{tpu_custom_call.1} parent=1 // pred_check_branch
      %154 = sbr.rel (%p152) target = $region25
    $region24: #{tpu_custom_call.1} parent=1 // pred_region
      %v155 = vld [vmem:[#allocation2] sm:$0x1]
      %v156 = vadd.f32 %v155, 0.0
      %157 = vst [vmem:[#allocation8] sm:$0x1] %v156
    $region25: #{tpu_custom_call.1} parent=1 // pred_fallthru
      _
    // Predicated region
    $region26: #{tpu_custom_call.1} parent=1 // pred_check
      _
    $region27: #{tpu_custom_call.1} parent=1 // pred_check_branch
      %159 = sbr.rel (0) target = $region29
    $region28: #{tpu_custom_call.1} parent=1 // pred_region
      %s161 = ssub.s32 16, 16
      %162 = vsyncadd [#allocation5], %s161
      %s164 = sshll.u32 [#allocation8], 4
      %s165 = int_to_ptr.vmem [resolvable:$true] %s164
      %167 = dma.vmem_to_hbm [thread:$0]  %s165, 16, %s2, [#allocation5]
    $region29: #{tpu_custom_call.1} parent=1 // pred_fallthru
      _
    // Predicated region
    $region30: #{tpu_custom_call.1} parent=1 // pred_check
      _
    $region31: #{tpu_custom_call.1} parent=1 // pred_check_branch
      %169 = sbr.rel (0) target = $region33
    $region32: #{tpu_custom_call.1} parent=1 // pred_region
      %170 = dma.done [#allocation5], 16
    $region33: #{tpu_custom_call.1} parent=1 // pred_fallthru
      _
    %171 = vsyncpa [#allocation4], 1
    %172 = vsyncpa [#allocation7], 1
    %173 = vsyncpa [#allocation5], 1

</llo_original>
